<compile_context>
chip_gen: v7x
topology: tpu7x:2x2x1
jax: 0.10.0
libtpu: 0.0.40
codegen_flags: <defaults>
</compile_context>

<pallas_src>
import jax
import jax.numpy as jnp
from jax.experimental import pallas as pl
from jax.experimental.pallas import tpu as pltpu  # noqa: F401  (TPU backend)

IN_FEATURES = 2
OUT_FEATURES = 2


def fused_affine_kernel(x_ref, p_ref, o_ref):
    # p_ref packs all fused parameters in one slab:
    #   rows [0 : IN_FEATURES)           -> W_fused  (in, out)
    #   row  [IN_FEATURES]               -> b_fused  (1, out)
    x = x_ref[...]                                     # (M, 2)
    w = p_ref[0:IN_FEATURES, :]                        # (2, 2)
    b = p_ref[IN_FEATURES:IN_FEATURES + 1, :]          # (1, 2)
    # K == 2: skip the MXU entirely; VPU broadcast-mul + add does the
    # contraction in a couple of bundles.
    acc = x[:, 0:1] * w[0:1, :] + x[:, 1:2] * w[1:2, :]
    # No redundant (y+y+y)/3 — the stack/mean of identical copies is identity.
    o_ref[...] = acc + b


def mlp3_forward(x, params):
    (w1, b1), (w2, b2), (w3, b3) = params
    # Host-side algebraic fusion of the three affine layers:
    #   ((x@W1 + b1)@W2 + b2)@W3 + b3
    #     == x @ (W1@W2@W3) + ((b1@W2 + b2)@W3 + b3)
    w_fused = w1 @ w2 @ w3                             # (2, 2)
    b_fused = (b1 @ w2 + b2) @ w3 + b3                 # (1, 2)
    packed = jnp.concatenate([w_fused, b_fused], axis=0)  # (3, 2) single slab

    M, F = x.shape
    full = lambda shape: pl.BlockSpec(shape, lambda: (0,) * len(shape))
    # TODO(synk): if batch M ever becomes large, add a grid over M with a
    # lane-dense (>=128) feature layout and weights at a constant block index.
    return pl.pallas_call(
        fused_affine_kernel,
        out_shape=jax.ShapeDtypeStruct((M, F), jnp.float32),
        in_specs=[full(x.shape), full(packed.shape)],
        out_specs=full((M, F)),
    )(x, packed)


def init_linear_params(key, in_features, out_features):
    # Deterministic init mimicking PyTorch's default uniform(-1/sqrt(in), 1/sqrt(in)).
    kw, kb = jax.random.split(key)
    bound = 1.0 / jnp.sqrt(jnp.float32(in_features))
    # Stored as (in, out) so the math is x @ W  (== x @ W_torch.T).
    w = jax.random.uniform(kw, (in_features, out_features), jnp.float32, -bound, bound)
    b = jax.random.uniform(kb, (1, out_features), jnp.float32, -bound, bound)
    return w, b


def reference_forward(x, params):
    # Unfused reference matching the original torch module exactly.
    y = x
    for w, b in params:
        y = y @ w + b
    return jnp.mean(jnp.stack((y, y, y), axis=1), axis=1)


if __name__ == "__main__":
    key = jax.random.PRNGKey(0)
    kx, k1, k2, k3 = jax.random.split(key, 4)

    x = jax.random.normal(kx, (2, IN_FEATURES), jnp.float32)
    params = [
        init_linear_params(k1, IN_FEATURES, OUT_FEATURES),
        init_linear_params(k2, IN_FEATURES, OUT_FEATURES),
        init_linear_params(k3, IN_FEATURES, OUT_FEATURES),
    ]

    out = mlp3_forward(x, params)
    jax.block_until_ready(out)

    ref = reference_forward(x, params)
    assert out.shape == (2, OUT_FEATURES)
    assert jnp.allclose(out, ref, atol=1e-5, rtol=1e-5)
    print("KERNEL_OK")
</pallas_src>

<mosaic_0001>
module attributes {stable_mosaic.version = 11 : i64} {
  func.func @fused_affine_kernel(%arg0: memref<2x2xf32, #tpu.memory_space<vmem>>, %arg1: memref<3x2xf32, #tpu.memory_space<vmem>>, %arg2: memref<2x2xf32, #tpu.memory_space<vmem>>) attributes {dimension_semantics = [], scalar_prefetch = 0 : i64, scratch_operands = 0 : i64, tpu.core_type = #tpu.core_type<tc>} {
    %c0 = arith.constant 0 : index
    %c0_0 = arith.constant 0 : index
    %0 = vector.load %arg0[%c0, %c0_0] : memref<2x2xf32, #tpu.memory_space<vmem>>, vector<2x2xf32>
    %c0_1 = arith.constant 0 : index
    %c0_2 = arith.constant 0 : index
    %1 = vector.load %arg1[%c0_1, %c0_2] : memref<3x2xf32, #tpu.memory_space<vmem>>, vector<2x2xf32>
    %c2 = arith.constant 2 : index
    %c0_3 = arith.constant 0 : index
    %2 = vector.load %arg1[%c2, %c0_3] : memref<3x2xf32, #tpu.memory_space<vmem>>, vector<1x2xf32>
    %3 = vector.extract_strided_slice %0 {offsets = [0, 0], sizes = [2, 1], strides = [1, 1]} : vector<2x2xf32> to vector<2x1xf32>
    %4 = vector.extract_strided_slice %1 {offsets = [0, 0], sizes = [1, 2], strides = [1, 1]} : vector<2x2xf32> to vector<1x2xf32>
    %5 = vector.broadcast %3 : vector<2x1xf32> to vector<2x2xf32>
    %6 = vector.broadcast %4 : vector<1x2xf32> to vector<2x2xf32>
    %7 = arith.mulf %5, %6 : vector<2x2xf32>
    %8 = vector.extract_strided_slice %0 {offsets = [0, 1], sizes = [2, 1], strides = [1, 1]} : vector<2x2xf32> to vector<2x1xf32>
    %9 = vector.extract_strided_slice %1 {offsets = [1, 0], sizes = [1, 2], strides = [1, 1]} : vector<2x2xf32> to vector<1x2xf32>
    %10 = vector.broadcast %8 : vector<2x1xf32> to vector<2x2xf32>
    %11 = vector.broadcast %9 : vector<1x2xf32> to vector<2x2xf32>
    %12 = arith.mulf %10, %11 : vector<2x2xf32>
    %13 = arith.addf %7, %12 : vector<2x2xf32>
    %14 = vector.broadcast %2 : vector<1x2xf32> to vector<2x2xf32>
    %15 = arith.addf %13, %14 : vector<2x2xf32>
    %c0_4 = arith.constant 0 : index
    %c0_5 = arith.constant 0 : index
    %16 = vector.load %arg2[%c0_4, %c0_5] : memref<2x2xf32, #tpu.memory_space<vmem>>, vector<2x2xf32>
    tpu.vector_store %arg2[%c0_4, %c0_5], %15 {strides = array<i32>} : memref<2x2xf32, #tpu.memory_space<vmem>>, vector<2x2xf32>,
    return
  }
}

</mosaic_0001>

<llo_original>
// kernel: tpu_custom_call.1
$region0: #{tpu_custom_call.1}
  #allocation0 [shape = 'u32[]', space=smem, size = 0x4, offset = 0x4, fixed_abs, tag = 'smem constant byte address 0x4 - core index']
  #allocation1 [shape = 'u32[144,128]{1,0:T(1,128)}', space=vmem, size = 0x12000, scoped, tag = 'internal scratch']
  %s0 = inlined_call_operand.vmem [shape: f32[2,2], index: 0, kind: input, shape index: {}]
  %s1 = inlined_call_operand.vmem [shape: f32[3,2], index: 1, kind: input, shape index: {}]
  %s2 = inlined_call_operand.hbm [shape: f32[2,2], index: 2, kind: output, shape index: {}]
  %s3 = sld [smem:[#allocation0]]
  $region18: #{tpu_custom_call.1} parent=0
    _
  %s5 = ssub.s32 1, %s3
  %s6 = scalar_select 0, %s5, %s3
  $region1: #{tpu_custom_call.1} parent=0
    #allocation2 [shape = 'u8[1024]{0}', space=vmem, size = 0x400, scoped, tag = 'output window, operand 0, single buffered']
    #allocation3 [shape = 's32[1]{0}', space=sflag, size = 0x4, scoped, tag = 'scoped memory for tpu_custom_call.1']
    %7 = vsyncpa [#allocation3], 0
    // Predicated region
    $region2: #{tpu_custom_call.1} parent=1 // pred_check
      _
    $region3: #{tpu_custom_call.1} parent=1 // pred_check_branch
      %9 = sbr.rel (0) target = $region5
    $region4: #{tpu_custom_call.1} parent=1 // pred_region
      _
    $region5: #{tpu_custom_call.1} parent=1 // pred_fallthru
      _
    // Predicated region
    $region6: #{tpu_custom_call.1} parent=1 // pred_check
      _
    $region7: #{tpu_custom_call.1} parent=1 // pred_check_branch
      %11 = sbr.rel (0) target = $region9
    $region8: #{tpu_custom_call.1} parent=1 // pred_region
      _
    $region9: #{tpu_custom_call.1} parent=1 // pred_fallthru
      _
    %v12 = vld [vmem:[%s0] sm:$0x3]
    %v13 = vld [vmem:[%s1] sm:$0x3]
    %v14 = vld [vmem:[%s1 + $0x2] sm:$0x1]
    %16 = vset.pattern.permute.xlu0 0
    %17 = vperm.xlu0 %16, %v12
    %v18 = vpop.permute.xlu0 %17
    %v20 = vlaneseq
    %v21 = vshrl.u32 %v20, 7
    %v22 = vsub.s32 0, %v21
    %v23 = vrot.slane %v13, %v22
    %v24 = vmul.f32 %v18, %v23
    %25 = vset.pattern.permute.xlu0 1
    %26 = vperm.xlu0 %25, %v12
    %v27 = vpop.permute.xlu0 %26
    %v29 = vlaneseq
    %v30 = vshrl.u32 %v29, 7
    %v31 = vsub.s32 1, %v30
    %v32 = vrot.slane %v13, %v31
    %v33 = vmul.f32 %v27, %v32
    %v34 = vadd.f32 %v24, %v33
    %v35 = vlaneseq
    %v36 = vshrl.u32 %v35, 7
    %v37 = vsub.s32 0, %v36
    %v38 = vrot.slane %v14, %v37
    %v39 = vadd.f32 %v34, %v38
    %vm40 = vcmask 9216
    %41 = vst.msk [vmem:[#allocation2] sm:$0x3] %vm40, %v39
    // Predicated region
    $region10: #{tpu_custom_call.1} parent=1 // pred_check
      _
    $region11: #{tpu_custom_call.1} parent=1 // pred_check_branch
      %43 = sbr.rel (0) target = $region13
    $region12: #{tpu_custom_call.1} parent=1 // pred_region
      %s45 = ssub.s32 32, 32
      %46 = vsyncadd [#allocation3], %s45
      %s48 = sshll.u32 [#allocation2], 4
      %s49 = int_to_ptr.vmem [resolvable:$true] %s48
      %51 = dma.vmem_to_hbm [thread:$0]  %s49, 32, %s2, [#allocation3]
    $region13: #{tpu_custom_call.1} parent=1 // pred_fallthru
      _
    // Predicated region
    $region14: #{tpu_custom_call.1} parent=1 // pred_check
      _
    $region15: #{tpu_custom_call.1} parent=1 // pred_check_branch
      %53 = sbr.rel (0) target = $region17
    $region16: #{tpu_custom_call.1} parent=1 // pred_region
      %54 = dma.done [#allocation3], 32
    $region17: #{tpu_custom_call.1} parent=1 // pred_fallthru
      _
    %55 = vsyncpa [#allocation3], 1

</llo_original>
